<compile_context>
chip_gen: v6e
topology: v6e:2x2x1
jax: 0.10.0
libtpu: 0.0.40
codegen_flags: <defaults>
</compile_context>

<pallas_src>
import functools

import jax
import jax.numpy as jnp
from jax import lax
from jax.experimental import pallas as pl
from jax.experimental.pallas import tpu as pltpu


def _mlp_kernel(x_ref,
                w1_ref, b1_ref,
                w2_ref, b2_ref,
                w3_ref, b3_ref,
                w4_ref, b4_ref,
                w5_ref, b5_ref,
                o_ref, *, cols):
    """Fused 5-layer MLP on one batch tile, batch kept on the lane axis.

    x_ref : (batch_tile, d_in) bf16   (natural layout, no pre-transpose)
    w*_ref: (d_out, d_in) bf16 (PyTorch layout), b*_ref: (d_out, 1) f32
    o_ref : (batch_tile//cols, n_features, cols) f32 (lane-dense)
    """
    n_sub = x_ref.shape[0] // cols  # static

    def layer(h, w_ref, b_ref, contract_dims, relu=True):
        # bf16 x bf16 -> f32 accumulation on the MXU.
        y = lax.dot_general(w_ref[...], h,
                            dimension_numbers=(contract_dims, ((), ())),
                            preferred_element_type=jnp.float32)
        y = y + b_ref[...]           # (d_out, 1) broadcasts over the lane axis
        if relu:
            y = jnp.maximum(y, 0.0)  # f32 elementwise (native on all gens)
        return y

    def body(c, carry):
        r0 = pl.multiple_of(c * cols, cols)
        xs = x_ref[pl.ds(r0, cols), :]                 # (cols, d_in) bf16
        # Layer 1: contract W1 dim 1 against x dim 1 -> (d_out, cols).
        # Batch stays on lanes; no explicit transpose of x anywhere.
        h = layer(xs, w1_ref, b1_ref, ((1,), (1,))).astype(jnp.bfloat16)
        # Layers 2-4: standard feature-major matmuls.
        h = layer(h, w2_ref, b2_ref, ((1,), (0,))).astype(jnp.bfloat16)
        h = layer(h, w3_ref, b3_ref, ((1,), (0,))).astype(jnp.bfloat16)
        h = layer(h, w4_ref, b4_ref, ((1,), (0,))).astype(jnp.bfloat16)
        y = layer(h, w5_ref, b5_ref, ((1,), (0,)), relu=False)
        o_ref[c] = y.astype(o_ref.dtype)               # (n_features, cols)
        return carry

    lax.fori_loop(0, n_sub, body, 0, unroll=True)


def _round_up(x, m):
    return ((x + m - 1) // m) * m


def _choose_batch_tile(batch, max_tile=2048):
    """Lane-aligned batch tile: >= 4 grid steps whenever the batch allows
    (>= 2 per TensorCore on v7x so DMAs pipeline), capped at max_tile for
    per-step-overhead amortization vs VMEM headroom (sweep 2048-4096)."""
    bp = _round_up(batch, 128)
    tile = _round_up(-(-bp // 4), 128)     # ceil(bp/4), 128-aligned
    return max(128, min(tile, max_tile))


def linear_compression_forward(x, params, *, batch_tile=None):
    """x: (B, d_in) float; params: list of 5 (W, b) in PyTorch layout, i.e.
    W shape (d_out, d_in), b shape (d_out,).  Returns (B, n_features) f32."""
    assert len(params) == 5, "expects the 5-layer LinearCompression branch"
    B, d_in = x.shape
    if batch_tile is None:
        batch_tile = _choose_batch_tile(B)
    else:
        batch_tile = max(128, _round_up(batch_tile, 128))
    # Inner lane-slice width: keeps the whole 5-layer chain register-resident
    # (per-slice f32 activations stay well inside the 64 x 4 KiB vreg file).
    cols = 256 if batch_tile % 256 == 0 else 128
    Bp = _round_up(B, batch_tile)
    n_tiles = Bp // batch_tile
    n_sub = batch_tile // cols
    n_features = params[-1][0].shape[0]

    # Natural (B, d_in) layout: NO wrapper-side transpose of x.  The bf16 cast
    # stays here so it can fuse into x's producer.
    xb = x.astype(jnp.bfloat16)
    if Bp != B:
        xb = jnp.pad(xb, ((0, Bp - B), (0, 0)))

    flat_args = [xb]
    in_specs = [pl.BlockSpec((batch_tile, d_in), lambda i: (i, 0))]
    for (w, b) in params:
        d_o, d_i = w.shape
        flat_args.append(w.astype(jnp.bfloat16))
        flat_args.append(b.astype(jnp.float32).reshape(d_o, 1))
        # Grid-invariant blocks: fetched once, resident in VMEM for all steps.
        in_specs.append(pl.BlockSpec((d_o, d_i), lambda i: (0, 0)))
        in_specs.append(pl.BlockSpec((d_o, 1), lambda i: (0, 0)))

    # Lane-dense output (batch on lanes), sub-sliced along a major axis so the
    # in-kernel store never needs a dynamic lane offset.
    out_spec = pl.BlockSpec((n_sub, n_features, cols), lambda i: (i, 0, 0))

    fn = pl.pallas_call(
        functools.partial(_mlp_kernel, cols=cols),
        out_shape=jax.ShapeDtypeStruct((Bp // cols, n_features, cols),
                                       jnp.float32),
        grid_spec=pltpu.PrefetchScalarGridSpec(
            num_scalar_prefetch=0,
            grid=(n_tiles,),
            in_specs=in_specs,
            out_specs=out_spec,
        ),
        compiler_params=pltpu.CompilerParams(
            dimension_semantics=("parallel",)),
    )
    out3 = fn(*flat_args)                      # (Bp//cols, n_features, cols)
    # TODO(synk): skip this small transpose (and emit bf16) if downstream
    # accepts a feature-major / bf16 result.
    out = jnp.transpose(out3, (0, 2, 1)).reshape(Bp, n_features)
    return out[:B]


def init_params(key, d_in, in_features, n_features):
    """Deterministic init, PyTorch (out, in) weight layout; widths follow the
    sampling_frequency >= 1e-4 branch of LinearCompression."""
    widths = [d_in,
              in_features * 2,
              in_features * 4,
              in_features,
              n_features * 2,
              n_features]
    params = []
    for li in range(len(widths) - 1):
        key, kw, kb = jax.random.split(key, 3)
        fan_in, fan_out = widths[li], widths[li + 1]
        bound = 1.0 / (fan_in ** 0.5)
        w = jax.random.uniform(kw, (fan_out, fan_in), jnp.float32, -bound, bound)
        b = jax.random.uniform(kb, (fan_out,), jnp.float32, -bound, bound)
        params.append((w, b))
    return params


def reference_forward(x, params, matmul_dtype=jnp.float32):
    """Pure-JAX reference: y = x @ W.T + b, ReLU on all but the last layer.
    matmul_dtype=bfloat16 mimics the kernel's bf16 MXU inputs (f32 accum)."""
    h = x
    for i, (w, b) in enumerate(params):
        h = jnp.dot(h.astype(matmul_dtype), w.T.astype(matmul_dtype),
                    preferred_element_type=jnp.float32) + b
        if i < len(params) - 1:
            h = jnp.maximum(h, 0.0)
    return h


if __name__ == "__main__":
    key = jax.random.PRNGKey(0)
    k_x, k_p = jax.random.split(key)

    # Small, module-consistent shapes.
    batch = 16
    d_in = 32          # inferred by LazyLinear from the input
    in_features = 16
    n_features = 8

    x = jax.random.normal(k_x, (batch, d_in), dtype=jnp.float32)
    params = init_params(k_p, d_in, in_features, n_features)

    out = linear_compression_forward(x, params)
    out = jax.block_until_ready(out)
    assert out.shape == (batch, n_features)
    assert jnp.all(jnp.isfinite(out))

    # Tight check vs a bf16-matmul reference (same arithmetic as the kernel).
    ref_bf16 = reference_forward(x, params, matmul_dtype=jnp.bfloat16)
    assert jnp.allclose(out, ref_bf16, atol=5e-3, rtol=5e-3), \
        "mismatch vs bf16 reference"

    # Loose check vs the full-f32 reference (bf16 quantization error only).
    ref_f32 = reference_forward(x, params, matmul_dtype=jnp.float32)
    assert jnp.allclose(out, ref_f32, atol=1e-1, rtol=1e-1), \
        "mismatch vs f32 reference"

    print("KERNEL_OK")
</pallas_src>

<mosaic_0001>
module attributes {stable_mosaic.version = 11 : i64} {
  func.func @_mlp_kernel(%arg0: i32, %arg1: memref<128x32xbf16, #tpu.memory_space<vmem>>, %arg2: memref<32x32xbf16, #tpu.memory_space<vmem>>, %arg3: memref<32x1xf32, #tpu.memory_space<vmem>>, %arg4: memref<64x32xbf16, #tpu.memory_space<vmem>>, %arg5: memref<64x1xf32, #tpu.memory_space<vmem>>, %arg6: memref<16x64xbf16, #tpu.memory_space<vmem>>, %arg7: memref<16x1xf32, #tpu.memory_space<vmem>>, %arg8: memref<16x16xbf16, #tpu.memory_space<vmem>>, %arg9: memref<16x1xf32, #tpu.memory_space<vmem>>, %arg10: memref<8x16xbf16, #tpu.memory_space<vmem>>, %arg11: memref<8x1xf32, #tpu.memory_space<vmem>>, %arg12: memref<1x8x128xf32, #tpu.memory_space<vmem>>) attributes {dimension_semantics = [#tpu.dimension_semantics<parallel>], iteration_bounds = array<i64: 1>, scalar_prefetch = 0 : i64, scratch_operands = 0 : i64, tpu.core_type = #tpu.core_type<tc>, window_params = [{transform_indices = @transform_0, window_bounds = array<i64: 128, 32>}, {pipeline_mode = #tpu.pipeline_mode<synchronous>, transform_indices = @transform_1, window_bounds = array<i64: 32, 32>}, {pipeline_mode = #tpu.pipeline_mode<synchronous>, transform_indices = @transform_2, window_bounds = array<i64: 32, 1>}, {pipeline_mode = #tpu.pipeline_mode<synchronous>, transform_indices = @transform_3, window_bounds = array<i64: 64, 32>}, {pipeline_mode = #tpu.pipeline_mode<synchronous>, transform_indices = @transform_4, window_bounds = array<i64: 64, 1>}, {pipeline_mode = #tpu.pipeline_mode<synchronous>, transform_indices = @transform_5, window_bounds = array<i64: 16, 64>}, {pipeline_mode = #tpu.pipeline_mode<synchronous>, transform_indices = @transform_6, window_bounds = array<i64: 16, 1>}, {pipeline_mode = #tpu.pipeline_mode<synchronous>, transform_indices = @transform_7, window_bounds = array<i64: 16, 16>}, {pipeline_mode = #tpu.pipeline_mode<synchronous>, transform_indices = @transform_8, window_bounds = array<i64: 16, 1>}, {pipeline_mode = #tpu.pipeline_mode<synchronous>, transform_indices = @transform_9, window_bounds = array<i64: 8, 16>}, {pipeline_mode = #tpu.pipeline_mode<synchronous>, transform_indices = @transform_10, window_bounds = array<i64: 8, 1>}, {transform_indices = @transform_11, window_bounds = array<i64: 1, 8, 128>}]} {
    %c0_i32 = arith.constant 0 : i32
    %c128_i32 = arith.constant 128 : i32
    %0 = arith.muli %c0_i32, %c128_i32 : i32
    %1 = tpu.assume_multiple %0, 128 : i32
    %2 = arith.index_cast %1 : i32 to index
    %c0 = arith.constant 0 : index
    %3 = vector.load %arg1[%2, %c0] : memref<128x32xbf16, #tpu.memory_space<vmem>>, vector<128x32xbf16>
    %c0_0 = arith.constant 0 : index
    %c0_1 = arith.constant 0 : index
    %4 = vector.load %arg2[%c0_0, %c0_1] : memref<32x32xbf16, #tpu.memory_space<vmem>>, vector<32x32xbf16>
    %cst = arith.constant dense<0.000000e+00> : vector<32x128xf32>
    %5 = tpu.matmul %4, %3, %cst {dimension_numbers = #tpu.dot_dimension_numbers<[1], [1], [0], [0], [0, 0, 1, 0], [], []>} : vector<32x32xbf16>, vector<128x32xbf16>, vector<32x128xf32> -> vector<32x128xf32>
    %c0_2 = arith.constant 0 : index
    %c0_3 = arith.constant 0 : index
    %6 = vector.load %arg3[%c0_2, %c0_3] : memref<32x1xf32, #tpu.memory_space<vmem>>, vector<32x1xf32>
    %7 = vector.broadcast %6 : vector<32x1xf32> to vector<32x128xf32>
    %8 = arith.addf %5, %7 : vector<32x128xf32>
    %cst_4 = arith.constant 0.000000e+00 : f32
    %9 = vector.broadcast %cst_4 : f32 to vector<32x128xf32>
    %10 = arith.maximumf %8, %9 : vector<32x128xf32>
    %11 = arith.truncf %10 : vector<32x128xf32> to vector<32x128xbf16>
    %c0_5 = arith.constant 0 : index
    %c0_6 = arith.constant 0 : index
    %12 = vector.load %arg4[%c0_5, %c0_6] : memref<64x32xbf16, #tpu.memory_space<vmem>>, vector<64x32xbf16>
    %cst_7 = arith.constant dense<0.000000e+00> : vector<64x128xf32>
    %13 = tpu.matmul %12, %11, %cst_7 {dimension_numbers = #tpu.dot_dimension_numbers<[1], [0], [0], [1], [0, 0, 1, 1], [], []>} : vector<64x32xbf16>, vector<32x128xbf16>, vector<64x128xf32> -> vector<64x128xf32>
    %c0_8 = arith.constant 0 : index
    %c0_9 = arith.constant 0 : index
    %14 = vector.load %arg5[%c0_8, %c0_9] : memref<64x1xf32, #tpu.memory_space<vmem>>, vector<64x1xf32>
    %15 = vector.broadcast %14 : vector<64x1xf32> to vector<64x128xf32>
    %16 = arith.addf %13, %15 : vector<64x128xf32>
    %cst_10 = arith.constant 0.000000e+00 : f32
    %17 = vector.broadcast %cst_10 : f32 to vector<64x128xf32>
    %18 = arith.maximumf %16, %17 : vector<64x128xf32>
    %19 = arith.truncf %18 : vector<64x128xf32> to vector<64x128xbf16>
    %c0_11 = arith.constant 0 : index
    %c0_12 = arith.constant 0 : index
    %20 = vector.load %arg6[%c0_11, %c0_12] : memref<16x64xbf16, #tpu.memory_space<vmem>>, vector<16x64xbf16>
    %cst_13 = arith.constant dense<0.000000e+00> : vector<16x128xf32>
    %21 = tpu.matmul %20, %19, %cst_13 {dimension_numbers = #tpu.dot_dimension_numbers<[1], [0], [0], [1], [0, 0, 1, 1], [], []>} : vector<16x64xbf16>, vector<64x128xbf16>, vector<16x128xf32> -> vector<16x128xf32>
    %c0_14 = arith.constant 0 : index
    %c0_15 = arith.constant 0 : index
    %22 = vector.load %arg7[%c0_14, %c0_15] : memref<16x1xf32, #tpu.memory_space<vmem>>, vector<16x1xf32>
    %23 = vector.broadcast %22 : vector<16x1xf32> to vector<16x128xf32>
    %24 = arith.addf %21, %23 : vector<16x128xf32>
    %cst_16 = arith.constant 0.000000e+00 : f32
    %25 = vector.broadcast %cst_16 : f32 to vector<16x128xf32>
    %26 = arith.maximumf %24, %25 : vector<16x128xf32>
    %27 = arith.truncf %26 : vector<16x128xf32> to vector<16x128xbf16>
    %c0_17 = arith.constant 0 : index
    %c0_18 = arith.constant 0 : index
    %28 = vector.load %arg8[%c0_17, %c0_18] : memref<16x16xbf16, #tpu.memory_space<vmem>>, vector<16x16xbf16>
    %cst_19 = arith.constant dense<0.000000e+00> : vector<16x128xf32>
    %29 = tpu.matmul %28, %27, %cst_19 {dimension_numbers = #tpu.dot_dimension_numbers<[1], [0], [0], [1], [0, 0, 1, 1], [], []>} : vector<16x16xbf16>, vector<16x128xbf16>, vector<16x128xf32> -> vector<16x128xf32>
    %c0_20 = arith.constant 0 : index
    %c0_21 = arith.constant 0 : index
    %30 = vector.load %arg9[%c0_20, %c0_21] : memref<16x1xf32, #tpu.memory_space<vmem>>, vector<16x1xf32>
    %31 = vector.broadcast %30 : vector<16x1xf32> to vector<16x128xf32>
    %32 = arith.addf %29, %31 : vector<16x128xf32>
    %cst_22 = arith.constant 0.000000e+00 : f32
    %33 = vector.broadcast %cst_22 : f32 to vector<16x128xf32>
    %34 = arith.maximumf %32, %33 : vector<16x128xf32>
    %35 = arith.truncf %34 : vector<16x128xf32> to vector<16x128xbf16>
    %c0_23 = arith.constant 0 : index
    %c0_24 = arith.constant 0 : index
    %36 = vector.load %arg10[%c0_23, %c0_24] : memref<8x16xbf16, #tpu.memory_space<vmem>>, vector<8x16xbf16>
    %cst_25 = arith.constant dense<0.000000e+00> : vector<8x128xf32>
    %37 = tpu.matmul %36, %35, %cst_25 {dimension_numbers = #tpu.dot_dimension_numbers<[1], [0], [0], [1], [0, 0, 1, 1], [], []>} : vector<8x16xbf16>, vector<16x128xbf16>, vector<8x128xf32> -> vector<8x128xf32>
    %c0_26 = arith.constant 0 : index
    %c0_27 = arith.constant 0 : index
    %38 = vector.load %arg11[%c0_26, %c0_27] : memref<8x1xf32, #tpu.memory_space<vmem>>, vector<8x1xf32>
    %39 = vector.broadcast %38 : vector<8x1xf32> to vector<8x128xf32>
    %40 = arith.addf %37, %39 : vector<8x128xf32>
    %41 = arith.index_cast %c0_i32 : i32 to index
    %c0_28 = arith.constant 0 : index
    %c0_29 = arith.constant 0 : index
    %42 = vector.load %arg12[%41, %c0_28, %c0_29] : memref<1x8x128xf32, #tpu.memory_space<vmem>>, vector<1x8x128xf32>
    %43 = vector.shape_cast %42 : vector<1x8x128xf32> to vector<8x128xf32>
    %44 = vector.shape_cast %40 : vector<8x128xf32> to vector<1x8x128xf32>
    tpu.vector_store %arg12[%41, %c0_28, %c0_29], %44 {strides = array<i32>} : memref<1x8x128xf32, #tpu.memory_space<vmem>>, vector<1x8x128xf32>,
    %c1_i32 = arith.constant 1 : i32
    return
  }
  func.func @transform_0(%arg0: i32) -> (i32, i32) {
    %c0_i32 = arith.constant 0 : i32
    %c0_i32_0 = arith.constant 0 : i32
    return %arg0, %c0_i32 : i32, i32
  }
  func.func @transform_1(%arg0: i32) -> (i32, i32) {
    %c0_i32 = arith.constant 0 : i32
    %c0_i32_0 = arith.constant 0 : i32
    %c0_i32_1 = arith.constant 0 : i32
    return %c0_i32, %c0_i32_0 : i32, i32
  }
  func.func @transform_2(%arg0: i32) -> (i32, i32) {
    %c0_i32 = arith.constant 0 : i32
    %c0_i32_0 = arith.constant 0 : i32
    %c0_i32_1 = arith.constant 0 : i32
    return %c0_i32, %c0_i32_0 : i32, i32
  }
  func.func @transform_3(%arg0: i32) -> (i32, i32) {
    %c0_i32 = arith.constant 0 : i32
    %c0_i32_0 = arith.constant 0 : i32
    %c0_i32_1 = arith.constant 0 : i32
    return %c0_i32, %c0_i32_0 : i32, i32
  }
  func.func @transform_4(%arg0: i32) -> (i32, i32) {
    %c0_i32 = arith.constant 0 : i32
    %c0_i32_0 = arith.constant 0 : i32
    %c0_i32_1 = arith.constant 0 : i32
    return %c0_i32, %c0_i32_0 : i32, i32
  }
  func.func @transform_5(%arg0: i32) -> (i32, i32) {
    %c0_i32 = arith.constant 0 : i32
    %c0_i32_0 = arith.constant 0 : i32
    %c0_i32_1 = arith.constant 0 : i32
    return %c0_i32, %c0_i32_0 : i32, i32
  }
  func.func @transform_6(%arg0: i32) -> (i32, i32) {
    %c0_i32 = arith.constant 0 : i32
    %c0_i32_0 = arith.constant 0 : i32
    %c0_i32_1 = arith.constant 0 : i32
    return %c0_i32, %c0_i32_0 : i32, i32
  }
  func.func @transform_7(%arg0: i32) -> (i32, i32) {
    %c0_i32 = arith.constant 0 : i32
    %c0_i32_0 = arith.constant 0 : i32
    %c0_i32_1 = arith.constant 0 : i32
    return %c0_i32, %c0_i32_0 : i32, i32
  }
  func.func @transform_8(%arg0: i32) -> (i32, i32) {
    %c0_i32 = arith.constant 0 : i32
    %c0_i32_0 = arith.constant 0 : i32
    %c0_i32_1 = arith.constant 0 : i32
    return %c0_i32, %c0_i32_0 : i32, i32
  }
  func.func @transform_9(%arg0: i32) -> (i32, i32) {
    %c0_i32 = arith.constant 0 : i32
    %c0_i32_0 = arith.constant 0 : i32
    %c0_i32_1 = arith.constant 0 : i32
    return %c0_i32, %c0_i32_0 : i32, i32
  }
  func.func @transform_10(%arg0: i32) -> (i32, i32) {
    %c0_i32 = arith.constant 0 : i32
    %c0_i32_0 = arith.constant 0 : i32
    %c0_i32_1 = arith.constant 0 : i32
    return %c0_i32, %c0_i32_0 : i32, i32
  }
  func.func @transform_11(%arg0: i32) -> (i32, i32, i32) {
    %c0_i32 = arith.constant 0 : i32
    %c0_i32_0 = arith.constant 0 : i32
    %c0_i32_1 = arith.constant 0 : i32
    return %arg0, %c0_i32, %c0_i32_0 : i32, i32, i32
  }
}

</mosaic_0001>

<llo_original>
// kernel: tpu_custom_call.1
$region0: #{tpu_custom_call.1}
  #allocation0 [shape = 'u32[]', space=smem, size = 0x4, offset = 0x4, fixed_abs, tag = 'smem constant byte address 0x4 - core index']
  #allocation1 [shape = 'u32[144,128]{1,0:T(1,128)}', space=vmem, size = 0x12000, scoped, tag = 'internal scratch']
  %s0 = inlined_call_operand.vmem [shape: bf16[128,32], index: 0, kind: input, shape index: {}]
  %s1 = inlined_call_operand.vmem [shape: bf16[32,32], index: 1, kind: input, shape index: {}]
  %s2 = inlined_call_operand.vmem [shape: f32[32,1], index: 2, kind: input, shape index: {}]
  %s3 = inlined_call_operand.vmem [shape: bf16[64,32], index: 3, kind: input, shape index: {}]
  %s4 = inlined_call_operand.vmem [shape: f32[64,1], index: 4, kind: input, shape index: {}]
  %s5 = inlined_call_operand.vmem [shape: bf16[16,64], index: 5, kind: input, shape index: {}]
  %s6 = inlined_call_operand.vmem [shape: f32[16,1], index: 6, kind: input, shape index: {}]
  %s7 = inlined_call_operand.vmem [shape: bf16[16,16], index: 7, kind: input, shape index: {}]
  %s8 = inlined_call_operand.vmem [shape: f32[16,1], index: 8, kind: input, shape index: {}]
  %s9 = inlined_call_operand.vmem [shape: bf16[8,16], index: 9, kind: input, shape index: {}]
  %s10 = inlined_call_operand.vmem [shape: f32[8,1], index: 10, kind: input, shape index: {}]
  %s11 = inlined_call_operand.hbm [shape: f32[1,8,128], index: 11, kind: output, shape index: {}]
  %s12 = sld [smem:[#allocation0]]
  $region54: #{tpu_custom_call.1} parent=0
    _
  %s14 = ssub.s32 1, %s12
  %s15 = scalar_select 0, %s14, %s12
  $region1: #{tpu_custom_call.1} parent=0
    #allocation2 [shape = 'u8[4096]{0}', space=vmem, size = 0x1000, scoped, tag = 'output window, operand 0, single buffered']
    #allocation3 [shape = 's32[1]{0}', space=sflag, size = 0x4, scoped, tag = 'scoped memory for tpu_custom_call.1']
    %16 = vsyncpa [#allocation3], 0
    // Predicated region
    $region2: #{tpu_custom_call.1} parent=1 // pred_check
      _
    $region3: #{tpu_custom_call.1} parent=1 // pred_check_branch
      %18 = sbr.rel (0) target = $region5
    $region4: #{tpu_custom_call.1} parent=1 // pred_region
      _
    $region5: #{tpu_custom_call.1} parent=1 // pred_fallthru
      _
    // Predicated region
    $region6: #{tpu_custom_call.1} parent=1 // pred_check
      _
    $region7: #{tpu_custom_call.1} parent=1 // pred_check_branch
      %20 = sbr.rel (0) target = $region9
    $region8: #{tpu_custom_call.1} parent=1 // pred_region
      _
    $region9: #{tpu_custom_call.1} parent=1 // pred_fallthru
      _
    // Predicated region
    $region10: #{tpu_custom_call.1} parent=1 // pred_check
      _
    $region11: #{tpu_custom_call.1} parent=1 // pred_check_branch
      %22 = sbr.rel (0) target = $region13
    $region12: #{tpu_custom_call.1} parent=1 // pred_region
      _
    $region13: #{tpu_custom_call.1} parent=1 // pred_fallthru
      _
    // Predicated region
    $region14: #{tpu_custom_call.1} parent=1 // pred_check
      _
    $region15: #{tpu_custom_call.1} parent=1 // pred_check_branch
      %24 = sbr.rel (0) target = $region17
    $region16: #{tpu_custom_call.1} parent=1 // pred_region
      _
    $region17: #{tpu_custom_call.1} parent=1 // pred_fallthru
      _
    // Predicated region
    $region18: #{tpu_custom_call.1} parent=1 // pred_check
      _
    $region19: #{tpu_custom_call.1} parent=1 // pred_check_branch
      %26 = sbr.rel (0) target = $region21
    $region20: #{tpu_custom_call.1} parent=1 // pred_region
      _
    $region21: #{tpu_custom_call.1} parent=1 // pred_fallthru
      _
    // Predicated region
    $region22: #{tpu_custom_call.1} parent=1 // pred_check
      _
    $region23: #{tpu_custom_call.1} parent=1 // pred_check_branch
      %28 = sbr.rel (0) target = $region25
    $region24: #{tpu_custom_call.1} parent=1 // pred_region
      _
    $region25: #{tpu_custom_call.1} parent=1 // pred_fallthru
      _
    // Predicated region
    $region26: #{tpu_custom_call.1} parent=1 // pred_check
      _
    $region27: #{tpu_custom_call.1} parent=1 // pred_check_branch
      %30 = sbr.rel (0) target = $region29
    $region28: #{tpu_custom_call.1} parent=1 // pred_region
      _
    $region29: #{tpu_custom_call.1} parent=1 // pred_fallthru
      _
    // Predicated region
    $region30: #{tpu_custom_call.1} parent=1 // pred_check
      _
    $region31: #{tpu_custom_call.1} parent=1 // pred_check_branch
      %32 = sbr.rel (0) target = $region33
    $region32: #{tpu_custom_call.1} parent=1 // pred_region
      _
    $region33: #{tpu_custom_call.1} parent=1 // pred_fallthru
      _
    // Predicated region
    $region34: #{tpu_custom_call.1} parent=1 // pred_check
      _
    $region35: #{tpu_custom_call.1} parent=1 // pred_check_branch
      %34 = sbr.rel (0) target = $region37
    $region36: #{tpu_custom_call.1} parent=1 // pred_region
      _
    $region37: #{tpu_custom_call.1} parent=1 // pred_fallthru
      _
    // Predicated region
    $region38: #{tpu_custom_call.1} parent=1 // pred_check
      _
    $region39: #{tpu_custom_call.1} parent=1 // pred_check_branch
      %36 = sbr.rel (0) target = $region41
    $region40: #{tpu_custom_call.1} parent=1 // pred_region
      _
    $region41: #{tpu_custom_call.1} parent=1 // pred_fallthru
      _
    // Predicated region
    $region42: #{tpu_custom_call.1} parent=1 // pred_check
      _
    $region43: #{tpu_custom_call.1} parent=1 // pred_check_branch
      %38 = sbr.rel (0) target = $region45
    $region44: #{tpu_custom_call.1} parent=1 // pred_region
      _
    $region45: #{tpu_custom_call.1} parent=1 // pred_fallthru
      _
    %v40 = vld [vmem:[%s0] sm:$0xf]
    %v41 = vld [vmem:[%s0 + $0x4] sm:$0xf]
    %v42 = vld [vmem:[%s0 + $0x8] sm:$0xf]
    %v43 = vld [vmem:[%s0 + $0xc] sm:$0xf]
    %v44 = vld [vmem:[%s0 + $0x10] sm:$0xf]
    %v45 = vld [vmem:[%s0 + $0x14] sm:$0xf]
    %v46 = vld [vmem:[%s0 + $0x18] sm:$0xf]
    %v47 = vld [vmem:[%s0 + $0x1c] sm:$0xf]
    %v48 = vld [vmem:[%s0 + $0x20] sm:$0xf]
    %v49 = vld [vmem:[%s0 + $0x24] sm:$0xf]
    %v50 = vld [vmem:[%s0 + $0x28] sm:$0xf]
    %v51 = vld [vmem:[%s0 + $0x2c] sm:$0xf]
    %v52 = vld [vmem:[%s0 + $0x30] sm:$0xf]
    %v53 = vld [vmem:[%s0 + $0x34] sm:$0xf]
    %v54 = vld [vmem:[%s0 + $0x38] sm:$0xf]
    %v55 = vld [vmem:[%s0 + $0x3c] sm:$0xf]
    %v56 = vld [vmem:[%s1] sm:$0xf]
    %v57 = vld [vmem:[%s1 + $0x4] sm:$0xf]
    %v58 = vld [vmem:[%s1 + $0x8] sm:$0xf]
    %v59 = vld [vmem:[%s1 + $0xc] sm:$0xf]
    %v60 = vld [vmem:[%s2] sm:$0xff]
    %v61 = vld [vmem:[%s2 + $0x8] sm:$0xff]
    %v62 = vld [vmem:[%s2 + $0x10] sm:$0xff]
    %v63 = vld [vmem:[%s2 + $0x18] sm:$0xff]
    %65 = vset.pattern.permute.xlu0 0
    %66 = vperm.xlu0 %65, %v60
    %v67 = vpop.permute.xlu0 %66
    %70 = vset.pattern.permute.xlu0 0
    %71 = vperm.xlu0 %70, %v61
    %v72 = vpop.permute.xlu0 %71
    %75 = vset.pattern.permute.xlu0 0
    %76 = vperm.xlu0 %75, %v62
    %v77 = vpop.permute.xlu0 %76
    %80 = vset.pattern.permute.xlu0 0
    %81 = vperm.xlu0 %80, %v63
    %v82 = vpop.permute.xlu0 %81
    %v88 = vunpack.c.l.b16 %v56
    %v89 = vunpack.c.l.b16 %v57
    %v90 = vunpack.c.l.b16 %v58
    %v91 = vunpack.c.l.b16 %v59
    %v92 = vpack.c.b16 %v89, %v88
    %v93 = vpack.c.b16 %v91, %v90
    %v110 = vunpack.c.l.b16 %v40
    %v111 = vunpack.c.l.b16 %v41
    %v112 = vunpack.c.l.b16 %v42
    %v113 = vunpack.c.l.b16 %v43
    %v114 = vunpack.c.l.b16 %v44
    %v115 = vunpack.c.l.b16 %v45
    %v116 = vunpack.c.l.b16 %v46
    %v117 = vunpack.c.l.b16 %v47
    %v118 = vunpack.c.l.b16 %v48
    %v119 = vunpack.c.l.b16 %v49
    %v120 = vunpack.c.l.b16 %v50
    %v121 = vunpack.c.l.b16 %v51
    %v122 = vunpack.c.l.b16 %v52
    %v123 = vunpack.c.l.b16 %v53
    %v124 = vunpack.c.l.b16 %v54
    %v125 = vunpack.c.l.b16 %v55
    %v126 = vpack.c.b16 %v111, %v110
    %v127 = vpack.c.b16 %v113, %v112
    %v128 = vpack.c.b16 %v115, %v114
    %v129 = vpack.c.b16 %v117, %v116
    %v130 = vpack.c.b16 %v119, %v118
    %v131 = vpack.c.b16 %v121, %v120
    %v132 = vpack.c.b16 %v123, %v122
    %v133 = vpack.c.b16 %v125, %v124
    %vm134 = vcmask 261120
    %v136 = vsel %vm134, %v92, 0
    %v139 = vsel %vm134, %v93, 0
    %v142 = vsel %vm134, %v126, 0
    %v145 = vsel %vm134, %v127, 0
    %v148 = vsel %vm134, %v128, 0
    %v151 = vsel %vm134, %v129, 0
    %v154 = vsel %vm134, %v130, 0
    %v157 = vsel %vm134, %v131, 0
    %v160 = vsel %vm134, %v132, 0
    %v163 = vsel %vm134, %v133, 0
    %165 = vmatprep.subr.bf16.mxu0 0
    %166 = vmatpush1.bf16.xpose.msra.mxu0 %v163
    %167 = vmatprep.subr.bf16.mxu0 0
    %168 = vmatpush1.bf16.xpose.msra.mxu0 %v160
    %169 = vmatprep.subr.bf16.mxu0 0
    %170 = vmatpush1.bf16.xpose.msra.mxu0 %v157
    %171 = vmatprep.subr.bf16.mxu0 0
    %172 = vmatpush1.bf16.xpose.msra.mxu0 %v154
    %173 = vmatprep.subr.bf16.mxu0 0
    %174 = vmatpush1.bf16.xpose.msra.mxu0 %v151
    %175 = vmatprep.subr.bf16.mxu0 0
    %176 = vmatpush1.bf16.xpose.msra.mxu0 %v148
    %177 = vmatprep.subr.bf16.mxu0 0
    %178 = vmatpush1.bf16.xpose.msra.mxu0 %v145
    %179 = vmatprep.subr.bf16.mxu0 0
    %180 = vmatpush1.bf16.xpose.msra.mxu0 %v142
    %181 = vmatprep.subr.bf16.mxu0 0
    %182 = vmatpush2.bf16.xpose.msra.mxu0 0
    %183 = vmatprep.subr.bf16.mxu0 0
    %184 = vmatpush2.bf16.xpose.msra.mxu0 0
    %185 = vmatprep.subr.bf16.mxu0 0
    %186 = vmatpush2.bf16.xpose.msra.mxu0 0
    %187 = vmatprep.subr.bf16.mxu0 0
    %188 = vmatpush2.bf16.xpose.msra.mxu0 0
    %189 = vmatprep.subr.bf16.mxu0 0
    %190 = vmatpush2.bf16.xpose.msra.mxu0 0
    %191 = vmatprep.subr.bf16.mxu0 0
    %192 = vmatpush2.bf16.xpose.msra.mxu0 0
    %193 = vmatprep.subr.bf16.mxu0 0
    %194 = vmatpush2.bf16.xpose.msra.mxu0 0
    %195 = vmatprep.subr.bf16.mxu0 0
    %196 = vmatpush2.bf16.xpose.msra.mxu0 0
    %197 = vmatprep.mubr.bf16.mxu0 0
    %198 = vmatmul.mubr.bf16.gmra.mxu0 %v136
    %v199 = vpop.f32.mrf.mxu0
    %v200 = vadd.f32 %v67, %v199
    %v201 = vpop.f32.mrf.mxu0
    %v202 = vpop.f32.mrf.mxu0
    %v203 = vadd.f32 %v72, %v202
    %v204 = vpop.f32.mrf.mxu0
    %205 = vmatprep.mubr.bf16.mxu0 0
    %206 = vmatmul.mubr.bf16.gmra.mxu0 %v139
    %v207 = vpop.f32.mrf.mxu0
    %v208 = vadd.f32 %v77, %v207
    %v209 = vpop.f32.mrf.mxu0
    %v210 = vpop.f32.mrf.mxu0
    %v211 = vadd.f32 %v82, %v210
    %v212 = vpop.f32.mrf.mxu0
    %213 = vdwg.mxu0
    %v214 = vmax.f32 %v200, 0.0
    %v215 = vmax.f32 %v203, 0.0
    %v216 = vmax.f32 %v208, 0.0
    %v217 = vmax.f32 %v211, 0.0
    %v218 = vpack.c.bf16 %v215, %v214
    %v219 = vpack.c.bf16 %v217, %v216
    %v220 = vld [vmem:[%s3] sm:$0xf]
    %v221 = vld [vmem:[%s3 + $0x4] sm:$0xf]
    %v222 = vld [vmem:[%s3 + $0x8] sm:$0xf]
    %v223 = vld [vmem:[%s3 + $0xc] sm:$0xf]
    %v224 = vld [vmem:[%s3 + $0x10] sm:$0xf]
    %v225 = vld [vmem:[%s3 + $0x14] sm:$0xf]
    %v226 = vld [vmem:[%s3 + $0x18] sm:$0xf]
    %v227 = vld [vmem:[%s3 + $0x1c] sm:$0xf]
    %v228 = vld [vmem:[%s4] sm:$0xff]
    %v229 = vld [vmem:[%s4 + $0x8] sm:$0xff]
    %v230 = vld [vmem:[%s4 + $0x10] sm:$0xff]
    %v231 = vld [vmem:[%s4 + $0x18] sm:$0xff]
    %v232 = vld [vmem:[%s4 + $0x20] sm:$0xff]
    %v233 = vld [vmem:[%s4 + $0x28] sm:$0xff]
    %v234 = vld [vmem:[%s4 + $0x30] sm:$0xff]
    %v235 = vld [vmem:[%s4 + $0x38] sm:$0xff]
    %237 = vset.pattern.permute.xlu0 0
    %238 = vperm.xlu0 %237, %v228
    %v239 = vpop.permute.xlu0 %238
    %242 = vset.pattern.permute.xlu0 0
    %243 = vperm.xlu0 %242, %v229
    %v244 = vpop.permute.xlu0 %243
    %247 = vset.pattern.permute.xlu0 0
    %248 = vperm.xlu0 %247, %v230
    %v249 = vpop.permute.xlu0 %248
    %252 = vset.pattern.permute.xlu0 0
    %253 = vperm.xlu0 %252, %v231
    %v254 = vpop.permute.xlu0 %253
    %257 = vset.pattern.permute.xlu0 0
    %258 = vperm.xlu0 %257, %v232
    %v259 = vpop.permute.xlu0 %258
    %262 = vset.pattern.permute.xlu0 0
    %263 = vperm.xlu0 %262, %v233
    %v264 = vpop.permute.xlu0 %263
    %267 = vset.pattern.permute.xlu0 0
    %268 = vperm.xlu0 %267, %v234
    %v269 = vpop.permute.xlu0 %268
    %272 = vset.pattern.permute.xlu0 0
    %273 = vperm.xlu0 %272, %v235
    %v274 = vpop.permute.xlu0 %273
    %v284 = vunpack.c.l.b16 %v220
    %v285 = vunpack.c.l.b16 %v221
    %v286 = vunpack.c.l.b16 %v222
    %v287 = vunpack.c.l.b16 %v223
    %v288 = vunpack.c.l.b16 %v224
    %v289 = vunpack.c.l.b16 %v225
    %v290 = vunpack.c.l.b16 %v226
    %v291 = vunpack.c.l.b16 %v227
    %v292 = vpack.c.b16 %v285, %v284
    %v293 = vpack.c.b16 %v287, %v286
    %v294 = vpack.c.b16 %v289, %v288
    %v295 = vpack.c.b16 %v291, %v290
    %v297 = vsel %vm134, %v292, 0
    %v300 = vsel %vm134, %v293, 0
    %v303 = vsel %vm134, %v294, 0
    %v306 = vsel %vm134, %v295, 0
    %308 = vmatprep.subr.bf16.mxu0 0
    %309 = vmatpush1.bf16.msra.mxu0 0
    %310 = vmatprep.subr.bf16.mxu0 0
    %311 = vmatpush1.bf16.msra.mxu0 0
    %312 = vmatprep.subr.bf16.mxu0 0
    %313 = vmatpush1.bf16.msra.mxu0 0
    %314 = vmatprep.subr.bf16.mxu0 0
    %315 = vmatpush1.bf16.msra.mxu0 0
    %316 = vmatprep.subr.bf16.mxu0 0
    %317 = vmatpush1.bf16.msra.mxu0 0
    %318 = vmatprep.subr.bf16.mxu0 0
    %319 = vmatpush1.bf16.msra.mxu0 0
    %320 = vmatprep.subr.bf16.mxu0 0
    %321 = vmatpush1.bf16.msra.mxu0 %v219
    %322 = vmatprep.subr.bf16.mxu0 0
    %323 = vmatpush1.bf16.msra.mxu0 %v218
    %324 = vmatprep.subr.bf16.mxu0 0
    %325 = vmatpush2.bf16.msra.mxu0 0
    %326 = vmatprep.subr.bf16.mxu0 0
    %327 = vmatpush2.bf16.msra.mxu0 0
    %328 = vmatprep.subr.bf16.mxu0 0
    %329 = vmatpush2.bf16.msra.mxu0 0
    %330 = vmatprep.subr.bf16.mxu0 0
    %331 = vmatpush2.bf16.msra.mxu0 0
    %332 = vmatprep.subr.bf16.mxu0 0
    %333 = vmatpush2.bf16.msra.mxu0 0
    %334 = vmatprep.subr.bf16.mxu0 0
    %335 = vmatpush2.bf16.msra.mxu0 0
    %336 = vmatprep.subr.bf16.mxu0 0
    %337 = vmatpush2.bf16.msra.mxu0 0
    %338 = vmatprep.subr.bf16.mxu0 0
    %339 = vmatpush2.bf16.msra.mxu0 0
    %340 = vmatprep.mubr.bf16.mxu0 0
    %341 = vmatmul.mubr.bf16.gmra.mxu0 %v297
    %v342 = vpop.f32.mrf.mxu0
    %v343 = vadd.f32 %v239, %v342
    %v344 = vpop.f32.mrf.mxu0
    %v345 = vpop.f32.mrf.mxu0
    %v346 = vadd.f32 %v244, %v345
    %v347 = vpop.f32.mrf.mxu0
    %348 = vmatprep.mubr.bf16.mxu0 0
    %349 = vmatmul.mubr.bf16.gmra.mxu0 %v300
    %v350 = vpop.f32.mrf.mxu0
    %v351 = vadd.f32 %v249, %v350
    %v352 = vpop.f32.mrf.mxu0
    %v353 = vpop.f32.mrf.mxu0
    %v354 = vadd.f32 %v254, %v353
    %v355 = vpop.f32.mrf.mxu0
    %356 = vmatprep.mubr.bf16.mxu0 0
    %357 = vmatmul.mubr.bf16.gmra.mxu0 %v303
    %v358 = vpop.f32.mrf.mxu0
    %v359 = vadd.f32 %v259, %v358
    %v360 = vpop.f32.mrf.mxu0
    %v361 = vpop.f32.mrf.mxu0
    %v362 = vadd.f32 %v264, %v361
    %v363 = vpop.f32.mrf.mxu0
    %364 = vmatprep.mubr.bf16.mxu0 0
    %365 = vmatmul.mubr.bf16.gmra.mxu0 %v306
    %v366 = vpop.f32.mrf.mxu0
    %v367 = vadd.f32 %v269, %v366
    %v368 = vpop.f32.mrf.mxu0
    %v369 = vpop.f32.mrf.mxu0
    %v370 = vadd.f32 %v274, %v369
    %v371 = vpop.f32.mrf.mxu0
    %372 = vdwg.mxu0
    %v373 = vmax.f32 %v343, 0.0
    %v374 = vmax.f32 %v346, 0.0
    %v375 = vmax.f32 %v351, 0.0
    %v376 = vmax.f32 %v354, 0.0
    %v377 = vmax.f32 %v359, 0.0
    %v378 = vmax.f32 %v362, 0.0
    %v379 = vmax.f32 %v367, 0.0
    %v380 = vmax.f32 %v370, 0.0
    %v381 = vpack.c.bf16 %v374, %v373
    %v382 = vpack.c.bf16 %v376, %v375
    %v383 = vpack.c.bf16 %v378, %v377
    %v384 = vpack.c.bf16 %v380, %v379
    %v385 = vld [vmem:[%s5] sm:$0xf]
    %v386 = vld [vmem:[%s5 + $0x4] sm:$0xf]
    %v387 = vld [vmem:[%s6] sm:$0xff]
    %v388 = vld [vmem:[%s6 + $0x8] sm:$0xff]
    %390 = vset.pattern.permute.xlu0 0
    %391 = vperm.xlu0 %390, %v387
    %v392 = vpop.permute.xlu0 %391
    %395 = vset.pattern.permute.xlu0 0
    %396 = vperm.xlu0 %395, %v388
    %v397 = vpop.permute.xlu0 %396
    %v401 = vunpack.c.l.b16 %v385
    %v402 = vunpack.c.l.b16 %v386
    %v403 = vpack.c.b16 %v402, %v401
    %vm404 = vcmask 523264
    %v406 = vsel %vm404, %v403, 0
    %408 = vmatprep.subr.bf16.mxu0 0
    %409 = vmatpush1.bf16.msra.mxu0 0
    %410 = vmatprep.subr.bf16.mxu0 0
    %411 = vmatpush1.bf16.msra.mxu0 0
    %412 = vmatprep.subr.bf16.mxu0 0
    %413 = vmatpush1.bf16.msra.mxu0 0
    %414 = vmatprep.subr.bf16.mxu0 0
    %415 = vmatpush1.bf16.msra.mxu0 0
    %416 = vmatprep.subr.bf16.mxu0 0
    %417 = vmatpush1.bf16.msra.mxu0 %v384
    %418 = vmatprep.subr.bf16.mxu0 0
    %419 = vmatpush1.bf16.msra.mxu0 %v383
    %420 = vmatprep.subr.bf16.mxu0 0
    %421 = vmatpush1.bf16.msra.mxu0 %v382
    %422 = vmatprep.subr.bf16.mxu0 0
    %423 = vmatpush1.bf16.msra.mxu0 %v381
    %424 = vmatprep.subr.bf16.mxu0 0
    %425 = vmatpush2.bf16.msra.mxu0 0
    %426 = vmatprep.subr.bf16.mxu0 0
    %427 = vmatpush2.bf16.msra.mxu0 0
    %428 = vmatprep.subr.bf16.mxu0 0
    %429 = vmatpush2.bf16.msra.mxu0 0
    %430 = vmatprep.subr.bf16.mxu0 0
    %431 = vmatpush2.bf16.msra.mxu0 0
    %432 = vmatprep.subr.bf16.mxu0 0
    %433 = vmatpush2.bf16.msra.mxu0 0
    %434 = vmatprep.subr.bf16.mxu0 0
    %435 = vmatpush2.bf16.msra.mxu0 0
    %436 = vmatprep.subr.bf16.mxu0 0
    %437 = vmatpush2.bf16.msra.mxu0 0
    %438 = vmatprep.subr.bf16.mxu0 0
    %439 = vmatpush2.bf16.msra.mxu0 0
    %440 = vmatprep.mubr.bf16.mxu0 0
    %441 = vmatmul.mubr.bf16.gmra.mxu0 %v406
    %v442 = vpop.f32.mrf.mxu0
    %v443 = vadd.f32 %v392, %v442
    %v444 = vpop.f32.mrf.mxu0
    %v445 = vpop.f32.mrf.mxu0
    %v446 = vadd.f32 %v397, %v445
    %v447 = vpop.f32.mrf.mxu0
    %448 = vdwg.mxu0
    %v449 = vmax.f32 %v443, 0.0
    %v450 = vmax.f32 %v446, 0.0
    %v451 = vpack.c.bf16 %v450, %v449
    %v452 = vld [vmem:[%s7] sm:$0xf]
    %v453 = vld [vmem:[%s7 + $0x4] sm:$0xf]
    %v454 = vld [vmem:[%s8] sm:$0xff]
    %v455 = vld [vmem:[%s8 + $0x8] sm:$0xff]
    %457 = vset.pattern.permute.xlu0 0
    %458 = vperm.xlu0 %457, %v454
    %v459 = vpop.permute.xlu0 %458
    %462 = vset.pattern.permute.xlu0 0
    %463 = vperm.xlu0 %462, %v455
    %v464 = vpop.permute.xlu0 %463
    %v468 = vunpack.c.l.b16 %v452
    %v469 = vunpack.c.l.b16 %v453
    %v470 = vpack.c.b16 %v469, %v468
    %vm471 = vcmask 130048
    %v473 = vsel %vm471, %v470, 0
    %475 = vmatprep.subr.bf16.mxu0 0
    %476 = vmatpush1.bf16.msra.mxu0 0
    %477 = vmatprep.subr.bf16.mxu0 0
    %478 = vmatpush1.bf16.msra.mxu0 0
    %479 = vmatprep.subr.bf16.mxu0 0
    %480 = vmatpush1.bf16.msra.mxu0 0
    %481 = vmatprep.subr.bf16.mxu0 0
    %482 = vmatpush1.bf16.msra.mxu0 0
    %483 = vmatprep.subr.bf16.mxu0 0
    %484 = vmatpush1.bf16.msra.mxu0 0
    %485 = vmatprep.subr.bf16.mxu0 0
    %486 = vmatpush1.bf16.msra.mxu0 0
    %487 = vmatprep.subr.bf16.mxu0 0
    %488 = vmatpush1.bf16.msra.mxu0 0
    %489 = vmatprep.subr.bf16.mxu0 0
    %490 = vmatpush1.bf16.msra.mxu0 %v451
    %491 = vmatprep.subr.bf16.mxu0 0
    %492 = vmatpush2.bf16.msra.mxu0 0
    %493 = vmatprep.subr.bf16.mxu0 0
    %494 = vmatpush2.bf16.msra.mxu0 0
    %495 = vmatprep.subr.bf16.mxu0 0
    %496 = vmatpush2.bf16.msra.mxu0 0
    %497 = vmatprep.subr.bf16.mxu0 0
    %498 = vmatpush2.bf16.msra.mxu0 0
    %499 = vmatprep.subr.bf16.mxu0 0
    %500 = vmatpush2.bf16.msra.mxu0 0
    %501 = vmatprep.subr.bf16.mxu0 0
    %502 = vmatpush2.bf16.msra.mxu0 0
    %503 = vmatprep.subr.bf16.mxu0 0
    %504 = vmatpush2.bf16.msra.mxu0 0
    %505 = vmatprep.subr.bf16.mxu0 0
    %506 = vmatpush2.bf16.msra.mxu0 0
    %507 = vmatprep.mubr.bf16.mxu0 0
    %508 = vmatmul.mubr.bf16.gmra.mxu0 %v473
    %v509 = vpop.f32.mrf.mxu0
    %v510 = vadd.f32 %v459, %v509
    %v511 = vpop.f32.mrf.mxu0
    %v512 = vpop.f32.mrf.mxu0
    %v513 = vadd.f32 %v464, %v512
    %v514 = vpop.f32.mrf.mxu0
    %515 = vdwg.mxu0
    %v516 = vmax.f32 %v510, 0.0
    %v517 = vmax.f32 %v513, 0.0
    %v518 = vpack.c.bf16 %v517, %v516
    %v519 = vld [vmem:[%s9] sm:$0xf]
    %v520 = vld [vmem:[%s10] sm:$0xff]
    %522 = vset.pattern.permute.xlu0 0
    %523 = vperm.xlu0 %522, %v520
    %v524 = vpop.permute.xlu0 %523
    %v527 = vsel %vm471, %v519, 0
    %529 = vmatprep.subr.bf16.mxu0 0
    %530 = vmatpush1.bf16.msra.mxu0 0
    %531 = vmatprep.subr.bf16.mxu0 0
    %532 = vmatpush1.bf16.msra.mxu0 0
    %533 = vmatprep.subr.bf16.mxu0 0
    %534 = vmatpush1.bf16.msra.mxu0 0
    %535 = vmatprep.subr.bf16.mxu0 0
    %536 = vmatpush1.bf16.msra.mxu0 0
    %537 = vmatprep.subr.bf16.mxu0 0
    %538 = vmatpush1.bf16.msra.mxu0 0
    %539 = vmatprep.subr.bf16.mxu0 0
    %540 = vmatpush1.bf16.msra.mxu0 0
    %541 = vmatprep.subr.bf16.mxu0 0
    %542 = vmatpush1.bf16.msra.mxu0 0
    %543 = vmatprep.subr.bf16.mxu0 0
    %544 = vmatpush1.bf16.msra.mxu0 %v518
    %545 = vmatprep.subr.bf16.mxu0 0
    %546 = vmatpush2.bf16.msra.mxu0 0
    %547 = vmatprep.subr.bf16.mxu0 0
    %548 = vmatpush2.bf16.msra.mxu0 0
    %549 = vmatprep.subr.bf16.mxu0 0
    %550 = vmatpush2.bf16.msra.mxu0 0
    %551 = vmatprep.subr.bf16.mxu0 0
    %552 = vmatpush2.bf16.msra.mxu0 0
    %553 = vmatprep.subr.bf16.mxu0 0
    %554 = vmatpush2.bf16.msra.mxu0 0
    %555 = vmatprep.subr.bf16.mxu0 0
    %556 = vmatpush2.bf16.msra.mxu0 0
    %557 = vmatprep.subr.bf16.mxu0 0
    %558 = vmatpush2.bf16.msra.mxu0 0
    %559 = vmatprep.subr.bf16.mxu0 0
    %560 = vmatpush2.bf16.msra.mxu0 0
    %561 = vmatprep.mubr.bf16.mxu0 0
    %562 = vmatmul.mubr.bf16.gmra.mxu0 %v527
    %v563 = vpop.f32.mrf.mxu0
    %v564 = vadd.f32 %v524, %v563
    %v565 = vpop.f32.mrf.mxu0
    %v566 = vpop.f32.mrf.mxu0
    %v567 = vpop.f32.mrf.mxu0
    %568 = vdwg.mxu0
    %569 = vst [vmem:[#allocation2] sm:$0xff] %v564
    // Predicated region
    $region46: #{tpu_custom_call.1} parent=1 // pred_check
      _
    $region47: #{tpu_custom_call.1} parent=1 // pred_check_branch
      %571 = sbr.rel (0) target = $region49
    $region48: #{tpu_custom_call.1} parent=1 // pred_region
      %s573 = ssub.s32 128, 128
      %574 = vsyncadd [#allocation3], %s573
      %s576 = sshll.u32 [#allocation2], 4
      %s577 = int_to_ptr.vmem [resolvable:$true] %s576
      %579 = dma.vmem_to_hbm [thread:$0]  %s577, 128, %s11, [#allocation3]
    $region49: #{tpu_custom_call.1} parent=1 // pred_fallthru
      _
    // Predicated region
    $region50: #{tpu_custom_call.1} parent=1 // pred_check
      _
    $region51: #{tpu_custom_call.1} parent=1 // pred_check_branch
      %581 = sbr.rel (0) target = $region53
    $region52: #{tpu_custom_call.1} parent=1 // pred_region
      %582 = dma.done [#allocation3], 128
    $region53: #{tpu_custom_call.1} parent=1 // pred_fallthru
      _
    %583 = vsyncpa [#allocation3], 1

</llo_original>
